<compile_context>
chip_gen: v7x
topology: tpu7x:2x2x1
jax: 0.10.0
libtpu: 0.0.40
codegen_flags: <defaults>
</compile_context>

<pallas_src>
import functools

import jax
import jax.numpy as jnp
from jax import lax
from jax.experimental import pallas as pl
from jax.experimental.pallas import tpu as pltpu

LN_EPS = 1e-5  # PyTorch nn.LayerNorm default eps


def _ln(x, gamma, beta):
    """LayerNorm over the last axis with elementwise affine (works in- and out-of-kernel)."""
    m = jnp.mean(x, axis=-1, keepdims=True)
    v = jnp.mean(jnp.square(x - m), axis=-1, keepdims=True)
    return (x - m) * lax.rsqrt(v + LN_EPS) * gamma + beta


# ------------------------------- Pallas kernel -------------------------------

def linear_net_kernel(*refs, num_linear, out_size):
    """Fused Linear_Net forward: LN -> (Linear(bias=False) -> ReLU -> LN) * num_linear.

    Ref layout:
      refs[0]                 x tile              (TB, input_size)
      refs[1], refs[2]        gamma0, beta0       input LayerNorm   (1, input_size)
      then, per linear layer i (i = 0..num_linear-1):
        W_i (in_i, out_i), gamma_{i+1} (1, out_i), beta_{i+1} (1, out_i)
      refs[-1]                output tile          (TB, out_padded)  -- lane-dense
    """
    x_ref = refs[0]
    o_ref = refs[-1]
    prm = refs[1:-1]

    h = x_ref[...].astype(jnp.float32)
    h = _ln(h, prm[0][...], prm[1][...])                      # input LayerNorm
    idx = 2
    for _ in range(num_linear):
        w = prm[idx][...]
        h = jnp.dot(h, w, preferred_element_type=jnp.float32)  # Linear (bias=False), MXU
        h = jnp.maximum(h, 0.0)                                 # ReLU
        h = _ln(h, prm[idx + 1][...], prm[idx + 2][...])        # LayerNorm
        idx += 3

    pad = o_ref.shape[-1] - out_size                            # lane-dense store
    if pad:
        h = jnp.concatenate([h, jnp.zeros((h.shape[0], pad), jnp.float32)], axis=-1)
    o_ref[...] = h


# ------------------------------- wrapper -------------------------------

def _round_up(n, m):
    return ((n + m - 1) // m) * m


@functools.partial(jax.jit, static_argnames=("output_size", "num_linear"))
def linear_net_forward(x, params, *, output_size, num_linear):
    B, in_size = x.shape
    out_padded = _round_up(output_size, 128)

    # Tile over batch only when it is large and the block obeys the (8,128) rule;
    # otherwise a single grid step processes the whole (small) batch.
    if B > 256 and B % 256 == 0 and in_size % 128 == 0:
        tb = 256
    else:
        tb = B
    grid = (B // tb,)

    in_specs = [pl.BlockSpec((tb, in_size), lambda i: (i, 0))]
    in_specs += [pl.BlockSpec(p.shape, lambda i: (0, 0)) for p in params]
    out_specs = pl.BlockSpec((tb, out_padded), lambda i: (i, 0))

    kernel = functools.partial(linear_net_kernel,
                               num_linear=num_linear, out_size=output_size)
    out = pl.pallas_call(
        kernel,
        out_shape=jax.ShapeDtypeStruct((B, out_padded), jnp.float32),
        grid=grid,
        in_specs=in_specs,
        out_specs=out_specs,
        compiler_params=pltpu.CompilerParams(dimension_semantics=("parallel",)),
    )(x, *params)
    return out[:, :output_size]


# ------------------------------- parameters -------------------------------

def init_linear_net_params(key, input_size, hidden_sizes, output_size):
    """PyTorch-equivalent init: LayerNorm(weight=1, bias=0); Linear xavier_uniform, gain=sqrt(2)."""
    gain = 2.0 ** 0.5                                  # nn.init.calculate_gain('relu')
    dims = [input_size] + list(hidden_sizes) + [output_size]
    keys = jax.random.split(key, len(dims) - 1)

    params = [jnp.ones((1, input_size), jnp.float32),  # input LayerNorm weight
              jnp.zeros((1, input_size), jnp.float32)]  # input LayerNorm bias
    for i, k in enumerate(keys):
        fan_in, fan_out = dims[i], dims[i + 1]
        bound = gain * (6.0 / (fan_in + fan_out)) ** 0.5
        w = jax.random.uniform(k, (fan_out, fan_in), jnp.float32, -bound, bound)
        params.append(w.T)                                     # stored as (in, out)
        params.append(jnp.ones((1, fan_out), jnp.float32))     # LayerNorm weight
        params.append(jnp.zeros((1, fan_out), jnp.float32))    # LayerNorm bias
    return params


# ------------------------------- pure-JAX reference -------------------------------

def linear_net_reference(x, params, num_linear):
    h = _ln(x.astype(jnp.float32), params[0], params[1])
    idx = 2
    for _ in range(num_linear):
        h = jnp.maximum(jnp.dot(h, params[idx]), 0.0)
        h = _ln(h, params[idx + 1], params[idx + 2])
        idx += 3
    return h


# ------------------------------- main -------------------------------

if __name__ == "__main__":
    B = 2
    input_size = 248           # e.g. cnn(128) + mh(20) + inventory(100) trunk usage
    hidden_sizes = [200, 100]
    output_size = 50
    seq_len = 8                # stored-but-unused by the reference module's forward
    num_linear = len(hidden_sizes) + 1

    key = jax.random.PRNGKey(0)
    k_x, k_p = jax.random.split(key)
    state = jax.random.normal(k_x, (B, input_size), jnp.float32)
    params = init_linear_net_params(k_p, input_size, hidden_sizes, output_size)

    out = linear_net_forward(state, params,
                             output_size=output_size, num_linear=num_linear)
    out = jax.block_until_ready(out)

    ref = linear_net_reference(state, params, num_linear)
    assert out.shape == (B, output_size)
    assert bool(jnp.all(jnp.isfinite(out)))
    assert bool(jnp.allclose(out, ref, rtol=5e-2, atol=5e-2)), \
        float(jnp.max(jnp.abs(out - ref)))
    print("KERNEL_OK")
</pallas_src>

<mosaic_0001>
module attributes {stable_mosaic.version = 11 : i64} {
  func.func @linear_net_kernel(%arg0: i32, %arg1: memref<2x248xf32, #tpu.memory_space<vmem>>, %arg2: memref<1x248xf32, #tpu.memory_space<vmem>>, %arg3: memref<1x248xf32, #tpu.memory_space<vmem>>, %arg4: memref<248x200xf32, #tpu.memory_space<vmem>>, %arg5: memref<1x200xf32, #tpu.memory_space<vmem>>, %arg6: memref<1x200xf32, #tpu.memory_space<vmem>>, %arg7: memref<200x100xf32, #tpu.memory_space<vmem>>, %arg8: memref<1x100xf32, #tpu.memory_space<vmem>>, %arg9: memref<1x100xf32, #tpu.memory_space<vmem>>, %arg10: memref<100x50xf32, #tpu.memory_space<vmem>>, %arg11: memref<1x50xf32, #tpu.memory_space<vmem>>, %arg12: memref<1x50xf32, #tpu.memory_space<vmem>>, %arg13: memref<2x128xf32, #tpu.memory_space<vmem>>) attributes {dimension_semantics = [#tpu.dimension_semantics<parallel>], iteration_bounds = array<i64: 1>, scalar_prefetch = 0 : i64, scratch_operands = 0 : i64, tpu.core_type = #tpu.core_type<tc>, window_params = [{transform_indices = @transform_0, window_bounds = array<i64: 2, 248>}, {pipeline_mode = #tpu.pipeline_mode<synchronous>, transform_indices = @transform_1, window_bounds = array<i64: 1, 248>}, {pipeline_mode = #tpu.pipeline_mode<synchronous>, transform_indices = @transform_2, window_bounds = array<i64: 1, 248>}, {pipeline_mode = #tpu.pipeline_mode<synchronous>, transform_indices = @transform_3, window_bounds = array<i64: 248, 200>}, {pipeline_mode = #tpu.pipeline_mode<synchronous>, transform_indices = @transform_4, window_bounds = array<i64: 1, 200>}, {pipeline_mode = #tpu.pipeline_mode<synchronous>, transform_indices = @transform_5, window_bounds = array<i64: 1, 200>}, {pipeline_mode = #tpu.pipeline_mode<synchronous>, transform_indices = @transform_6, window_bounds = array<i64: 200, 100>}, {pipeline_mode = #tpu.pipeline_mode<synchronous>, transform_indices = @transform_7, window_bounds = array<i64: 1, 100>}, {pipeline_mode = #tpu.pipeline_mode<synchronous>, transform_indices = @transform_8, window_bounds = array<i64: 1, 100>}, {pipeline_mode = #tpu.pipeline_mode<synchronous>, transform_indices = @transform_9, window_bounds = array<i64: 100, 50>}, {pipeline_mode = #tpu.pipeline_mode<synchronous>, transform_indices = @transform_10, window_bounds = array<i64: 1, 50>}, {pipeline_mode = #tpu.pipeline_mode<synchronous>, transform_indices = @transform_11, window_bounds = array<i64: 1, 50>}, {transform_indices = @transform_12, window_bounds = array<i64: 2, 128>}]} {
    %c0 = arith.constant 0 : index
    %c0_0 = arith.constant 0 : index
    %0 = vector.load %arg1[%c0, %c0_0] : memref<2x248xf32, #tpu.memory_space<vmem>>, vector<2x248xf32>
    %c0_1 = arith.constant 0 : index
    %c0_2 = arith.constant 0 : index
    %1 = vector.load %arg2[%c0_1, %c0_2] : memref<1x248xf32, #tpu.memory_space<vmem>>, vector<1x248xf32>
    %c0_3 = arith.constant 0 : index
    %c0_4 = arith.constant 0 : index
    %2 = vector.load %arg3[%c0_3, %c0_4] : memref<1x248xf32, #tpu.memory_space<vmem>>, vector<1x248xf32>
    %cst = arith.constant dense<0.000000e+00> : vector<2xf32>
    %3 = vector.multi_reduction <add>, %0, %cst [1] : vector<2x248xf32> to vector<2xf32>
    %4 = vector.shape_cast %3 : vector<2xf32> to vector<2x1xf32>
    %cst_5 = arith.constant 2.480000e+02 : f32
    %5 = vector.broadcast %cst_5 : f32 to vector<2x1xf32>
    %6 = arith.divf %4, %5 : vector<2x1xf32>
    %7 = vector.broadcast %6 : vector<2x1xf32> to vector<2x248xf32>
    %8 = arith.subf %0, %7 : vector<2x248xf32>
    %9 = arith.mulf %8, %8 : vector<2x248xf32>
    %cst_6 = arith.constant dense<0.000000e+00> : vector<2xf32>
    %10 = vector.multi_reduction <add>, %9, %cst_6 [1] : vector<2x248xf32> to vector<2xf32>
    %11 = vector.shape_cast %10 : vector<2xf32> to vector<2x1xf32>
    %cst_7 = arith.constant 2.480000e+02 : f32
    %12 = vector.broadcast %cst_7 : f32 to vector<2x1xf32>
    %13 = arith.divf %11, %12 : vector<2x1xf32>
    %14 = vector.broadcast %6 : vector<2x1xf32> to vector<2x248xf32>
    %15 = arith.subf %0, %14 : vector<2x248xf32>
    %cst_8 = arith.constant 9.99999974E-6 : f32
    %16 = vector.broadcast %cst_8 : f32 to vector<2x1xf32>
    %17 = arith.addf %13, %16 : vector<2x1xf32>
    %18 = math.rsqrt %17 : vector<2x1xf32>
    %19 = vector.broadcast %18 : vector<2x1xf32> to vector<2x248xf32>
    %20 = arith.mulf %15, %19 : vector<2x248xf32>
    %21 = vector.broadcast %1 : vector<1x248xf32> to vector<2x248xf32>
    %22 = arith.mulf %20, %21 : vector<2x248xf32>
    %23 = vector.broadcast %2 : vector<1x248xf32> to vector<2x248xf32>
    %24 = arith.addf %22, %23 : vector<2x248xf32>
    %c0_9 = arith.constant 0 : index
    %c0_10 = arith.constant 0 : index
    %25 = vector.load %arg4[%c0_9, %c0_10] : memref<248x200xf32, #tpu.memory_space<vmem>>, vector<248x200xf32>
    %cst_11 = arith.constant dense<0.000000e+00> : vector<2x200xf32>
    %26 = tpu.matmul %24, %25, %cst_11 {dimension_numbers = #tpu.dot_dimension_numbers<[1], [0], [0], [1], [0, 0, 1, 1], [], []>} : vector<2x248xf32>, vector<248x200xf32>, vector<2x200xf32> -> vector<2x200xf32>
    %cst_12 = arith.constant 0.000000e+00 : f32
    %27 = vector.broadcast %cst_12 : f32 to vector<2x200xf32>
    %28 = arith.maximumf %26, %27 : vector<2x200xf32>
    %c0_13 = arith.constant 0 : index
    %c0_14 = arith.constant 0 : index
    %29 = vector.load %arg5[%c0_13, %c0_14] : memref<1x200xf32, #tpu.memory_space<vmem>>, vector<1x200xf32>
    %c0_15 = arith.constant 0 : index
    %c0_16 = arith.constant 0 : index
    %30 = vector.load %arg6[%c0_15, %c0_16] : memref<1x200xf32, #tpu.memory_space<vmem>>, vector<1x200xf32>
    %cst_17 = arith.constant dense<0.000000e+00> : vector<2xf32>
    %31 = vector.multi_reduction <add>, %28, %cst_17 [1] : vector<2x200xf32> to vector<2xf32>
    %32 = vector.shape_cast %31 : vector<2xf32> to vector<2x1xf32>
    %cst_18 = arith.constant 2.000000e+02 : f32
    %33 = vector.broadcast %cst_18 : f32 to vector<2x1xf32>
    %34 = arith.divf %32, %33 : vector<2x1xf32>
    %35 = vector.broadcast %34 : vector<2x1xf32> to vector<2x200xf32>
    %36 = arith.subf %28, %35 : vector<2x200xf32>
    %37 = arith.mulf %36, %36 : vector<2x200xf32>
    %cst_19 = arith.constant dense<0.000000e+00> : vector<2xf32>
    %38 = vector.multi_reduction <add>, %37, %cst_19 [1] : vector<2x200xf32> to vector<2xf32>
    %39 = vector.shape_cast %38 : vector<2xf32> to vector<2x1xf32>
    %cst_20 = arith.constant 2.000000e+02 : f32
    %40 = vector.broadcast %cst_20 : f32 to vector<2x1xf32>
    %41 = arith.divf %39, %40 : vector<2x1xf32>
    %42 = vector.broadcast %34 : vector<2x1xf32> to vector<2x200xf32>
    %43 = arith.subf %28, %42 : vector<2x200xf32>
    %cst_21 = arith.constant 9.99999974E-6 : f32
    %44 = vector.broadcast %cst_21 : f32 to vector<2x1xf32>
    %45 = arith.addf %41, %44 : vector<2x1xf32>
    %46 = math.rsqrt %45 : vector<2x1xf32>
    %47 = vector.broadcast %46 : vector<2x1xf32> to vector<2x200xf32>
    %48 = arith.mulf %43, %47 : vector<2x200xf32>
    %49 = vector.broadcast %29 : vector<1x200xf32> to vector<2x200xf32>
    %50 = arith.mulf %48, %49 : vector<2x200xf32>
    %51 = vector.broadcast %30 : vector<1x200xf32> to vector<2x200xf32>
    %52 = arith.addf %50, %51 : vector<2x200xf32>
    %c0_22 = arith.constant 0 : index
    %c0_23 = arith.constant 0 : index
    %53 = vector.load %arg7[%c0_22, %c0_23] : memref<200x100xf32, #tpu.memory_space<vmem>>, vector<200x100xf32>
    %cst_24 = arith.constant dense<0.000000e+00> : vector<2x100xf32>
    %54 = tpu.matmul %52, %53, %cst_24 {dimension_numbers = #tpu.dot_dimension_numbers<[1], [0], [0], [1], [0, 0, 1, 1], [], []>} : vector<2x200xf32>, vector<200x100xf32>, vector<2x100xf32> -> vector<2x100xf32>
    %cst_25 = arith.constant 0.000000e+00 : f32
    %55 = vector.broadcast %cst_25 : f32 to vector<2x100xf32>
    %56 = arith.maximumf %54, %55 : vector<2x100xf32>
    %c0_26 = arith.constant 0 : index
    %c0_27 = arith.constant 0 : index
    %57 = vector.load %arg8[%c0_26, %c0_27] : memref<1x100xf32, #tpu.memory_space<vmem>>, vector<1x100xf32>
    %c0_28 = arith.constant 0 : index
    %c0_29 = arith.constant 0 : index
    %58 = vector.load %arg9[%c0_28, %c0_29] : memref<1x100xf32, #tpu.memory_space<vmem>>, vector<1x100xf32>
    %cst_30 = arith.constant dense<0.000000e+00> : vector<2xf32>
    %59 = vector.multi_reduction <add>, %56, %cst_30 [1] : vector<2x100xf32> to vector<2xf32>
    %60 = vector.shape_cast %59 : vector<2xf32> to vector<2x1xf32>
    %cst_31 = arith.constant 1.000000e+02 : f32
    %61 = vector.broadcast %cst_31 : f32 to vector<2x1xf32>
    %62 = arith.divf %60, %61 : vector<2x1xf32>
    %63 = vector.broadcast %62 : vector<2x1xf32> to vector<2x100xf32>
    %64 = arith.subf %56, %63 : vector<2x100xf32>
    %65 = arith.mulf %64, %64 : vector<2x100xf32>
    %cst_32 = arith.constant dense<0.000000e+00> : vector<2xf32>
    %66 = vector.multi_reduction <add>, %65, %cst_32 [1] : vector<2x100xf32> to vector<2xf32>
    %67 = vector.shape_cast %66 : vector<2xf32> to vector<2x1xf32>
    %cst_33 = arith.constant 1.000000e+02 : f32
    %68 = vector.broadcast %cst_33 : f32 to vector<2x1xf32>
    %69 = arith.divf %67, %68 : vector<2x1xf32>
    %70 = vector.broadcast %62 : vector<2x1xf32> to vector<2x100xf32>
    %71 = arith.subf %56, %70 : vector<2x100xf32>
    %cst_34 = arith.constant 9.99999974E-6 : f32
    %72 = vector.broadcast %cst_34 : f32 to vector<2x1xf32>
    %73 = arith.addf %69, %72 : vector<2x1xf32>
    %74 = math.rsqrt %73 : vector<2x1xf32>
    %75 = vector.broadcast %74 : vector<2x1xf32> to vector<2x100xf32>
    %76 = arith.mulf %71, %75 : vector<2x100xf32>
    %77 = vector.broadcast %57 : vector<1x100xf32> to vector<2x100xf32>
    %78 = arith.mulf %76, %77 : vector<2x100xf32>
    %79 = vector.broadcast %58 : vector<1x100xf32> to vector<2x100xf32>
    %80 = arith.addf %78, %79 : vector<2x100xf32>
    %c0_35 = arith.constant 0 : index
    %c0_36 = arith.constant 0 : index
    %81 = vector.load %arg10[%c0_35, %c0_36] : memref<100x50xf32, #tpu.memory_space<vmem>>, vector<100x50xf32>
    %cst_37 = arith.constant dense<0.000000e+00> : vector<2x50xf32>
    %82 = tpu.matmul %80, %81, %cst_37 {dimension_numbers = #tpu.dot_dimension_numbers<[1], [0], [0], [1], [0, 0, 1, 1], [], []>} : vector<2x100xf32>, vector<100x50xf32>, vector<2x50xf32> -> vector<2x50xf32>
    %cst_38 = arith.constant 0.000000e+00 : f32
    %83 = vector.broadcast %cst_38 : f32 to vector<2x50xf32>
    %84 = arith.maximumf %82, %83 : vector<2x50xf32>
    %c0_39 = arith.constant 0 : index
    %c0_40 = arith.constant 0 : index
    %85 = vector.load %arg11[%c0_39, %c0_40] : memref<1x50xf32, #tpu.memory_space<vmem>>, vector<1x50xf32>
    %c0_41 = arith.constant 0 : index
    %c0_42 = arith.constant 0 : index
    %86 = vector.load %arg12[%c0_41, %c0_42] : memref<1x50xf32, #tpu.memory_space<vmem>>, vector<1x50xf32>
    %cst_43 = arith.constant dense<0.000000e+00> : vector<2xf32>
    %87 = vector.multi_reduction <add>, %84, %cst_43 [1] : vector<2x50xf32> to vector<2xf32>
    %88 = vector.shape_cast %87 : vector<2xf32> to vector<2x1xf32>
    %cst_44 = arith.constant 5.000000e+01 : f32
    %89 = vector.broadcast %cst_44 : f32 to vector<2x1xf32>
    %90 = arith.divf %88, %89 : vector<2x1xf32>
    %91 = vector.broadcast %90 : vector<2x1xf32> to vector<2x50xf32>
    %92 = arith.subf %84, %91 : vector<2x50xf32>
    %93 = arith.mulf %92, %92 : vector<2x50xf32>
    %cst_45 = arith.constant dense<0.000000e+00> : vector<2xf32>
    %94 = vector.multi_reduction <add>, %93, %cst_45 [1] : vector<2x50xf32> to vector<2xf32>
    %95 = vector.shape_cast %94 : vector<2xf32> to vector<2x1xf32>
    %cst_46 = arith.constant 5.000000e+01 : f32
    %96 = vector.broadcast %cst_46 : f32 to vector<2x1xf32>
    %97 = arith.divf %95, %96 : vector<2x1xf32>
    %98 = vector.broadcast %90 : vector<2x1xf32> to vector<2x50xf32>
    %99 = arith.subf %84, %98 : vector<2x50xf32>
    %cst_47 = arith.constant 9.99999974E-6 : f32
    %100 = vector.broadcast %cst_47 : f32 to vector<2x1xf32>
    %101 = arith.addf %97, %100 : vector<2x1xf32>
    %102 = math.rsqrt %101 : vector<2x1xf32>
    %103 = vector.broadcast %102 : vector<2x1xf32> to vector<2x50xf32>
    %104 = arith.mulf %99, %103 : vector<2x50xf32>
    %105 = vector.broadcast %85 : vector<1x50xf32> to vector<2x50xf32>
    %106 = arith.mulf %104, %105 : vector<2x50xf32>
    %107 = vector.broadcast %86 : vector<1x50xf32> to vector<2x50xf32>
    %108 = arith.addf %106, %107 : vector<2x50xf32>
    %cst_48 = arith.constant 0.000000e+00 : f32
    %109 = vector.broadcast %cst_48 : f32 to vector<2x78xf32>
    %110 = tpu.concatenate %108, %109 in 1 : vector<2x50xf32>, vector<2x78xf32> -> vector<2x128xf32>
    %c0_49 = arith.constant 0 : index
    %c0_50 = arith.constant 0 : index
    %111 = vector.load %arg13[%c0_49, %c0_50] : memref<2x128xf32, #tpu.memory_space<vmem>>, vector<2x128xf32>
    tpu.vector_store %arg13[%c0_49, %c0_50], %110 {strides = array<i32>} : memref<2x128xf32, #tpu.memory_space<vmem>>, vector<2x128xf32>,
    return
  }
  func.func @transform_0(%arg0: i32) -> (i32, i32) {
    %c0_i32 = arith.constant 0 : i32
    %c0_i32_0 = arith.constant 0 : i32
    return %arg0, %c0_i32 : i32, i32
  }
  func.func @transform_1(%arg0: i32) -> (i32, i32) {
    %c0_i32 = arith.constant 0 : i32
    %c0_i32_0 = arith.constant 0 : i32
    %c0_i32_1 = arith.constant 0 : i32
    return %c0_i32, %c0_i32_0 : i32, i32
  }
  func.func @transform_2(%arg0: i32) -> (i32, i32) {
    %c0_i32 = arith.constant 0 : i32
    %c0_i32_0 = arith.constant 0 : i32
    %c0_i32_1 = arith.constant 0 : i32
    return %c0_i32, %c0_i32_0 : i32, i32
  }
  func.func @transform_3(%arg0: i32) -> (i32, i32) {
    %c0_i32 = arith.constant 0 : i32
    %c0_i32_0 = arith.constant 0 : i32
    %c0_i32_1 = arith.constant 0 : i32
    return %c0_i32, %c0_i32_0 : i32, i32
  }
  func.func @transform_4(%arg0: i32) -> (i32, i32) {
    %c0_i32 = arith.constant 0 : i32
    %c0_i32_0 = arith.constant 0 : i32
    %c0_i32_1 = arith.constant 0 : i32
    return %c0_i32, %c0_i32_0 : i32, i32
  }
  func.func @transform_5(%arg0: i32) -> (i32, i32) {
    %c0_i32 = arith.constant 0 : i32
    %c0_i32_0 = arith.constant 0 : i32
    %c0_i32_1 = arith.constant 0 : i32
    return %c0_i32, %c0_i32_0 : i32, i32
  }
  func.func @transform_6(%arg0: i32) -> (i32, i32) {
    %c0_i32 = arith.constant 0 : i32
    %c0_i32_0 = arith.constant 0 : i32
    %c0_i32_1 = arith.constant 0 : i32
    return %c0_i32, %c0_i32_0 : i32, i32
  }
  func.func @transform_7(%arg0: i32) -> (i32, i32) {
    %c0_i32 = arith.constant 0 : i32
    %c0_i32_0 = arith.constant 0 : i32
    %c0_i32_1 = arith.constant 0 : i32
    return %c0_i32, %c0_i32_0 : i32, i32
  }
  func.func @transform_8(%arg0: i32) -> (i32, i32) {
    %c0_i32 = arith.constant 0 : i32
    %c0_i32_0 = arith.constant 0 : i32
    %c0_i32_1 = arith.constant 0 : i32
    return %c0_i32, %c0_i32_0 : i32, i32
  }
  func.func @transform_9(%arg0: i32) -> (i32, i32) {
    %c0_i32 = arith.constant 0 : i32
    %c0_i32_0 = arith.constant 0 : i32
    %c0_i32_1 = arith.constant 0 : i32
    return %c0_i32, %c0_i32_0 : i32, i32
  }
  func.func @transform_10(%arg0: i32) -> (i32, i32) {
    %c0_i32 = arith.constant 0 : i32
    %c0_i32_0 = arith.constant 0 : i32
    %c0_i32_1 = arith.constant 0 : i32
    return %c0_i32, %c0_i32_0 : i32, i32
  }
  func.func @transform_11(%arg0: i32) -> (i32, i32) {
    %c0_i32 = arith.constant 0 : i32
    %c0_i32_0 = arith.constant 0 : i32
    %c0_i32_1 = arith.constant 0 : i32
    return %c0_i32, %c0_i32_0 : i32, i32
  }
  func.func @transform_12(%arg0: i32) -> (i32, i32) {
    %c0_i32 = arith.constant 0 : i32
    %c0_i32_0 = arith.constant 0 : i32
    return %arg0, %c0_i32 : i32, i32
  }
}

</mosaic_0001>

<llo_original>
// kernel: linear_net_forward.1
$region0: #{linear_net_forward.1}
  #allocation0 [shape = 'u32[]', space=smem, size = 0x4, offset = 0x4, fixed_abs, tag = 'smem constant byte address 0x4 - core index']
  #allocation1 [shape = 'u32[144,128]{1,0:T(1,128)}', space=vmem, size = 0x12000, scoped, tag = 'internal scratch']
  %s0 = inlined_call_operand.vmem [shape: f32[2,248], index: 0, kind: input, shape index: {}]
  %s1 = inlined_call_operand.vmem [shape: f32[1,248], index: 1, kind: input, shape index: {}]
  %s2 = inlined_call_operand.vmem [shape: f32[1,248], index: 2, kind: input, shape index: {}]
  %s3 = inlined_call_operand.vmem [shape: f32[248,200], index: 3, kind: input, shape index: {}]
  %s4 = inlined_call_operand.vmem [shape: f32[1,200], index: 4, kind: input, shape index: {}]
  %s5 = inlined_call_operand.vmem [shape: f32[1,200], index: 5, kind: input, shape index: {}]
  %s6 = inlined_call_operand.vmem [shape: f32[200,100], index: 6, kind: input, shape index: {}]
  %s7 = inlined_call_operand.vmem [shape: f32[1,100], index: 7, kind: input, shape index: {}]
  %s8 = inlined_call_operand.vmem [shape: f32[1,100], index: 8, kind: input, shape index: {}]
  %s9 = inlined_call_operand.vmem [shape: f32[100,50], index: 9, kind: input, shape index: {}]
  %s10 = inlined_call_operand.vmem [shape: f32[1,50], index: 10, kind: input, shape index: {}]
  %s11 = inlined_call_operand.vmem [shape: f32[1,50], index: 11, kind: input, shape index: {}]
  %s12 = inlined_call_operand.hbm [shape: f32[2,128], index: 12, kind: output, shape index: {}]
  %s13 = sld [smem:[#allocation0]]
  $region58: #{linear_net_forward.1} parent=0
    _
  %s15 = ssub.s32 1, %s13
  %s16 = scalar_select 0, %s15, %s13
  $region1: #{linear_net_forward.1} parent=0
    #allocation2 [shape = 'u8[1024]{0}', space=vmem, size = 0x400, scoped, tag = 'output window, operand 0, single buffered']
    #allocation3 [shape = 's32[1]{0}', space=sflag, size = 0x4, scoped, tag = 'scoped memory for linear_net_forward.1']
    %17 = vsyncpa [#allocation3], 0
    // Predicated region
    $region2: #{linear_net_forward.1} parent=1 // pred_check
      _
    $region3: #{linear_net_forward.1} parent=1 // pred_check_branch
      %19 = sbr.rel (0) target = $region5
    $region4: #{linear_net_forward.1} parent=1 // pred_region
      _
    $region5: #{linear_net_forward.1} parent=1 // pred_fallthru
      _
    // Predicated region
    $region6: #{linear_net_forward.1} parent=1 // pred_check
      _
    $region7: #{linear_net_forward.1} parent=1 // pred_check_branch
      %21 = sbr.rel (0) target = $region9
    $region8: #{linear_net_forward.1} parent=1 // pred_region
      _
    $region9: #{linear_net_forward.1} parent=1 // pred_fallthru
      _
    // Predicated region
    $region10: #{linear_net_forward.1} parent=1 // pred_check
      _
    $region11: #{linear_net_forward.1} parent=1 // pred_check_branch
      %23 = sbr.rel (0) target = $region13
    $region12: #{linear_net_forward.1} parent=1 // pred_region
      _
    $region13: #{linear_net_forward.1} parent=1 // pred_fallthru
      _
    // Predicated region
    $region14: #{linear_net_forward.1} parent=1 // pred_check
      _
    $region15: #{linear_net_forward.1} parent=1 // pred_check_branch
      %25 = sbr.rel (0) target = $region17
    $region16: #{linear_net_forward.1} parent=1 // pred_region
      _
    $region17: #{linear_net_forward.1} parent=1 // pred_fallthru
      _
    // Predicated region
    $region18: #{linear_net_forward.1} parent=1 // pred_check
      _
    $region19: #{linear_net_forward.1} parent=1 // pred_check_branch
      %27 = sbr.rel (0) target = $region21
    $region20: #{linear_net_forward.1} parent=1 // pred_region
      _
    $region21: #{linear_net_forward.1} parent=1 // pred_fallthru
      _
    // Predicated region
    $region22: #{linear_net_forward.1} parent=1 // pred_check
      _
    $region23: #{linear_net_forward.1} parent=1 // pred_check_branch
      %29 = sbr.rel (0) target = $region25
    $region24: #{linear_net_forward.1} parent=1 // pred_region
      _
    $region25: #{linear_net_forward.1} parent=1 // pred_fallthru
      _
    // Predicated region
    $region26: #{linear_net_forward.1} parent=1 // pred_check
      _
    $region27: #{linear_net_forward.1} parent=1 // pred_check_branch
      %31 = sbr.rel (0) target = $region29
    $region28: #{linear_net_forward.1} parent=1 // pred_region
      _
    $region29: #{linear_net_forward.1} parent=1 // pred_fallthru
      _
    // Predicated region
    $region30: #{linear_net_forward.1} parent=1 // pred_check
      _
    $region31: #{linear_net_forward.1} parent=1 // pred_check_branch
      %33 = sbr.rel (0) target = $region33
    $region32: #{linear_net_forward.1} parent=1 // pred_region
      _
    $region33: #{linear_net_forward.1} parent=1 // pred_fallthru
      _
    // Predicated region
    $region34: #{linear_net_forward.1} parent=1 // pred_check
      _
    $region35: #{linear_net_forward.1} parent=1 // pred_check_branch
      %35 = sbr.rel (0) target = $region37
    $region36: #{linear_net_forward.1} parent=1 // pred_region
      _
    $region37: #{linear_net_forward.1} parent=1 // pred_fallthru
      _
    // Predicated region
    $region38: #{linear_net_forward.1} parent=1 // pred_check
      _
    $region39: #{linear_net_forward.1} parent=1 // pred_check_branch
      %37 = sbr.rel (0) target = $region41
    $region40: #{linear_net_forward.1} parent=1 // pred_region
      _
    $region41: #{linear_net_forward.1} parent=1 // pred_fallthru
      _
    // Predicated region
    $region42: #{linear_net_forward.1} parent=1 // pred_check
      _
    $region43: #{linear_net_forward.1} parent=1 // pred_check_branch
      %39 = sbr.rel (0) target = $region45
    $region44: #{linear_net_forward.1} parent=1 // pred_region
      _
    $region45: #{linear_net_forward.1} parent=1 // pred_fallthru
      _
    // Predicated region
    $region46: #{linear_net_forward.1} parent=1 // pred_check
      _
    $region47: #{linear_net_forward.1} parent=1 // pred_check_branch
      %41 = sbr.rel (0) target = $region49
    $region48: #{linear_net_forward.1} parent=1 // pred_region
      _
    $region49: #{linear_net_forward.1} parent=1 // pred_fallthru
      _
    %v42 = vld [vmem:[%s0] sm:$0xf]
    %v43 = vld [vmem:[%s1] sm:$0x3]
    %v44 = vld [vmem:[%s2] sm:$0x3]
    %v47 = vunpack.c.l.s4 1983009808
    %v48 = vunpack.c.0.s8 %v47
    %v49 = vlaneseq
    %v50 = vshrl.u32 %v49, 7
    %v51 = vsub.s32 %v48, %v50
    %v52 = vrot.slane %v42, %v51
    %v53 = vcombine.high %v52, %v52
    %vm56 = vcmask 1041408
    %v57 = vsel %vm56, %v52, 0.0
    %vm58 = vcmask 975872
    %v59 = vsel %vm58, %v53, 0.0
    %v60 = vadd.f32 %v57, %v59
    %61 = vadd.xlane.f32.xlu0 %v60
    %v62 = vpop.xlane.xlu0 %61
    %v63 = vrcp.pop 248.0
    %v64 = vmul.f32 %v62, %v63
    %v67 = vunpack.c.l.s4 269488144
    %v68 = vunpack.c.0.s8 %v67
    %v69 = vlaneseq
    %v70 = vshrl.u32 %v69, 7
    %v71 = vsub.s32 %v68, %v70
    %v72 = vrot.slane %v64, %v71
    %v74 = vsub.f32 %v42, %v72
    %v75 = vmul.f32 %v74, %v74
    %v78 = vunpack.c.l.s4 1983009808
    %v79 = vunpack.c.0.s8 %v78
    %v80 = vlaneseq
    %v81 = vshrl.u32 %v80, 7
    %v82 = vsub.s32 %v79, %v81
    %v83 = vrot.slane %v75, %v82
    %v84 = vcombine.high %v83, %v83
    %v87 = vsel %vm56, %v83, 0.0
    %v88 = vsel %vm58, %v84, 0.0
    %v89 = vadd.f32 %v87, %v88
    %90 = vadd.xlane.f32.xlu0 %v89
    %v91 = vpop.xlane.xlu0 %90
    %v92 = vmul.f32 %v91, %v63
    %v93 = vadd.f32 %v92, 1e-05
    %v94 = vrsqrt.pop %v93
    %v97 = vunpack.c.l.s4 269488144
    %v98 = vunpack.c.0.s8 %v97
    %v99 = vlaneseq
    %v100 = vshrl.u32 %v99, 7
    %v101 = vsub.s32 %v98, %v100
    %v102 = vrot.slane %v94, %v101
    %v104 = vmul.f32 %v74, %v102
    %v106 = vlaneseq
    %v107 = vshrl.u32 %v106, 7
    %v108 = vsub.s32 0, %v107
    %v109 = vrot.slane %v43, %v108
    %v110 = vlaneseq
    %v111 = vshrl.u32 %v110, 7
    %v112 = vsub.s32 1, %v111
    %v113 = vrot.slane %v43, %v112
    %v114 = vcombine.low %v109, %v113
    %v116 = vunpack.c.l.s4 1983009808
    %v117 = vunpack.c.0.s8 %v116
    %v118 = vlaneseq
    %v119 = vshrl.u32 %v118, 7
    %v120 = vsub.s32 %v117, %v119
    %v121 = vrot.slane %v114, %v120
    %v123 = vmul.f32 %v104, %v121
    %v125 = vlaneseq
    %v126 = vshrl.u32 %v125, 7
    %v127 = vsub.s32 0, %v126
    %v128 = vrot.slane %v44, %v127
    %v129 = vlaneseq
    %v130 = vshrl.u32 %v129, 7
    %v131 = vsub.s32 1, %v130
    %v132 = vrot.slane %v44, %v131
    %v133 = vcombine.low %v128, %v132
    %v135 = vunpack.c.l.s4 1983009808
    %v136 = vunpack.c.0.s8 %v135
    %v137 = vlaneseq
    %v138 = vshrl.u32 %v137, 7
    %v139 = vsub.s32 %v136, %v138
    %v140 = vrot.slane %v133, %v139
    %v142 = vadd.f32 %v123, %v140
    %v143 = vld [vmem:[%s3] sm:$0xff]
    %v144 = vld [vmem:[%s3 + $0x8] sm:$0xff]
    %v145 = vld [vmem:[%s3 + $0x10] sm:$0xff]
    %v146 = vld [vmem:[%s3 + $0x18] sm:$0xff]
    %v147 = vld [vmem:[%s3 + $0x20] sm:$0xff]
    %v148 = vld [vmem:[%s3 + $0x28] sm:$0xff]
    %v149 = vld [vmem:[%s3 + $0x30] sm:$0xff]
    %v150 = vld [vmem:[%s3 + $0x38] sm:$0xff]
    %v151 = vld [vmem:[%s3 + $0x40] sm:$0xff]
    %v152 = vld [vmem:[%s3 + $0x48] sm:$0xff]
    %v153 = vld [vmem:[%s3 + $0x50] sm:$0xff]
    %v154 = vld [vmem:[%s3 + $0x58] sm:$0xff]
    %v155 = vld [vmem:[%s3 + $0x60] sm:$0xff]
    %v156 = vld [vmem:[%s3 + $0x68] sm:$0xff]
    %v157 = vld [vmem:[%s3 + $0x70] sm:$0xff]
    %v158 = vld [vmem:[%s3 + $0x78] sm:$0xff]
    %v159 = vld [vmem:[%s3 + $0x80] sm:$0xff]
    %v160 = vld [vmem:[%s3 + $0x88] sm:$0xff]
    %v161 = vld [vmem:[%s3 + $0x90] sm:$0xff]
    %v162 = vld [vmem:[%s3 + $0x98] sm:$0xff]
    %v163 = vld [vmem:[%s3 + $0xa0] sm:$0xff]
    %v164 = vld [vmem:[%s3 + $0xa8] sm:$0xff]
    %v165 = vld [vmem:[%s3 + $0xb0] sm:$0xff]
    %v166 = vld [vmem:[%s3 + $0xb8] sm:$0xff]
    %v167 = vld [vmem:[%s3 + $0xc0] sm:$0xff]
    %v168 = vld [vmem:[%s3 + $0xc8] sm:$0xff]
    %v169 = vld [vmem:[%s3 + $0xd0] sm:$0xff]
    %v170 = vld [vmem:[%s3 + $0xd8] sm:$0xff]
    %v171 = vld [vmem:[%s3 + $0xe0] sm:$0xff]
    %v172 = vld [vmem:[%s3 + $0xe8] sm:$0xff]
    %v173 = vld [vmem:[%s3 + $0xf0] sm:$0xff]
    %v174 = vld [vmem:[%s3 + $0xf8] sm:$0xff]
    %v175 = vld [vmem:[%s3 + $0x100] sm:$0xff]
    %v176 = vld [vmem:[%s3 + $0x108] sm:$0xff]
    %v177 = vld [vmem:[%s3 + $0x110] sm:$0xff]
    %v178 = vld [vmem:[%s3 + $0x118] sm:$0xff]
    %v179 = vld [vmem:[%s3 + $0x120] sm:$0xff]
    %v180 = vld [vmem:[%s3 + $0x128] sm:$0xff]
    %v181 = vld [vmem:[%s3 + $0x130] sm:$0xff]
    %v182 = vld [vmem:[%s3 + $0x138] sm:$0xff]
    %v183 = vld [vmem:[%s3 + $0x140] sm:$0xff]
    %v184 = vld [vmem:[%s3 + $0x148] sm:$0xff]
    %v185 = vld [vmem:[%s3 + $0x150] sm:$0xff]
    %v186 = vld [vmem:[%s3 + $0x158] sm:$0xff]
    %v187 = vld [vmem:[%s3 + $0x160] sm:$0xff]
    %v188 = vld [vmem:[%s3 + $0x168] sm:$0xff]
    %v189 = vld [vmem:[%s3 + $0x170] sm:$0xff]
    %v190 = vld [vmem:[%s3 + $0x178] sm:$0xff]
    %v191 = vld [vmem:[%s3 + $0x180] sm:$0xff]
    %v192 = vld [vmem:[%s3 + $0x188] sm:$0xff]
    %v193 = vld [vmem:[%s3 + $0x190] sm:$0xff]
    %v194 = vld [vmem:[%s3 + $0x198] sm:$0xff]
    %v195 = vld [vmem:[%s3 + $0x1a0] sm:$0xff]
    %v196 = vld [vmem:[%s3 + $0x1a8] sm:$0xff]
    %v197 = vld [vmem:[%s3 + $0x1b0] sm:$0xff]
    %v198 = vld [vmem:[%s3 + $0x1b8] sm:$0xff]
    %v199 = vld [vmem:[%s3 + $0x1c0] sm:$0xff]
    %v200 = vld [vmem:[%s3 + $0x1c8] sm:$0xff]
    %v201 = vld [vmem:[%s3 + $0x1d0] sm:$0xff]
    %v202 = vld [vmem:[%s3 + $0x1d8] sm:$0xff]
    %v203 = vld [vmem:[%s3 + $0x1e0] sm:$0xff]
    %v204 = vld [vmem:[%s3 + $0x1e8] sm:$0xff]
    %v207 = vunpack.c.l.s4 1983009808
    %v208 = vunpack.c.0.s8 %v207
    %v209 = vlaneseq
    %v210 = vshrl.u32 %v209, 7
    %v211 = vsub.s32 %v208, %v210
    %v212 = vrot.slane %v142, %v211
    %v213 = vcombine.high %v212, %v212
    %vm215 = vcmask 982016
    %v216 = vsel %vm215, %v213, 0
    %218 = vmatprep.subr.mxu0 %v144
    %219 = vmatpush1.msra.mxu0 %v143
    %220 = vmatprep.subr.mxu0 %v146
    %221 = vmatpush1.msra.mxu0 %v145
    %222 = vmatprep.subr.mxu0 %v148
    %223 = vmatpush1.msra.mxu0 %v147
    %224 = vmatprep.subr.mxu0 %v150
    %225 = vmatpush1.msra.mxu0 %v149
    %226 = vmatprep.subr.mxu0 %v152
    %227 = vmatpush1.msra.mxu0 %v151
    %228 = vmatprep.subr.mxu0 %v154
    %229 = vmatpush1.msra.mxu0 %v153
    %230 = vmatprep.subr.mxu0 %v156
    %231 = vmatpush1.msra.mxu0 %v155
    %232 = vmatprep.subr.mxu0 %v158
    %233 = vmatpush1.msra.mxu0 %v157
    %234 = vmatprep.subr.mxu0 %v160
    %235 = vmatpush1.msra.mxu0 %v159
    %236 = vmatprep.subr.mxu0 %v162
    %237 = vmatpush1.msra.mxu0 %v161
    %238 = vmatprep.subr.mxu0 %v164
    %239 = vmatpush1.msra.mxu0 %v163
    %240 = vmatprep.subr.mxu0 %v166
    %241 = vmatpush1.msra.mxu0 %v165
    %242 = vmatprep.subr.mxu0 %v168
    %243 = vmatpush1.msra.mxu0 %v167
    %244 = vmatprep.subr.mxu0 %v170
    %245 = vmatpush1.msra.mxu0 %v169
    %246 = vmatprep.subr.mxu0 %v172
    %247 = vmatpush1.msra.mxu0 %v171
    %248 = vmatprep.subr.mxu0 %v174
    %249 = vmatpush1.msra.mxu0 %v173
    %250 = vmatprep.subr.mxu0 %v176
    %251 = vmatpush1.msra.mxu0 %v175
    %252 = vmatprep.subr.mxu0 %v178
    %253 = vmatpush1.msra.mxu0 %v177
    %254 = vmatprep.subr.mxu0 %v180
    %255 = vmatpush1.msra.mxu0 %v179
    %256 = vmatprep.subr.mxu0 %v182
    %257 = vmatpush1.msra.mxu0 %v181
    %258 = vmatprep.subr.mxu0 %v184
    %259 = vmatpush1.msra.mxu0 %v183
    %260 = vmatprep.subr.mxu0 %v186
    %261 = vmatpush1.msra.mxu0 %v185
    %262 = vmatprep.subr.mxu0 %v188
    %263 = vmatpush1.msra.mxu0 %v187
    %264 = vmatprep.subr.mxu0 %v190
    %265 = vmatpush1.msra.mxu0 %v189
    %266 = vmatprep.subr.mxu0 %v192
    %267 = vmatpush1.msra.mxu0 %v191
    %268 = vmatprep.subr.mxu0 %v194
    %269 = vmatpush1.msra.mxu0 %v193
    %270 = vmatprep.subr.mxu0 %v196
    %271 = vmatpush1.msra.mxu0 %v195
    %272 = vmatprep.subr.mxu0 %v198
    %273 = vmatpush1.msra.mxu0 %v197
    %274 = vmatprep.subr.mxu0 %v200
    %275 = vmatpush1.msra.mxu0 %v199
    %276 = vmatprep.subr.mxu0 %v202
    %277 = vmatpush1.msra.mxu0 %v201
    %278 = vmatprep.subr.mxu0 %v204
    %279 = vmatpush1.msra.mxu0 %v203
    %280 = vmatprep.subr.mxu0 0.0
    %281 = vmatpush1.msra.mxu0 0.0
    %282 = vmatprep.mubr.f32.mxu0 %v216
    %283 = vmatmul.mubr.f32.gmra.mrb[0].mxu0 %v212
    %v284 = vpop.f32.mrb[0].mxu0
    %v285 = vadd.f32 0.0, %v284
    %v286 = vpop.f32.mrb[0].mxu0
    %v287 = vadd.f32 0.0, %v286
    %288 = vdwg.mxu0
    %v289 = vmax.f32 %v285, 0.0
    %v290 = vmax.f32 %v287, 0.0
    %v291 = vld [vmem:[%s4] sm:$0x3]
    %v292 = vld [vmem:[%s5] sm:$0x3]
    %v293 = vsel %vm56, %v289, 0.0
    %vm294 = vcmask 582656
    %v295 = vsel %vm294, %v290, 0.0
    %v296 = vadd.f32 %v293, %v295
    %297 = vadd.xlane.f32.xlu0 %v296
    %v298 = vpop.xlane.xlu0 %297
    %v299 = vrcp.pop 200.0
    %v300 = vmul.f32 %v298, %v299
    %v301 = vsub.f32 %v289, %v300
    %v302 = vsub.f32 %v290, %v300
    %v303 = vmul.f32 %v301, %v301
    %v304 = vmul.f32 %v302, %v302
    %v305 = vsel %vm56, %v303, 0.0
    %v306 = vsel %vm294, %v304, 0.0
    %v307 = vadd.f32 %v305, %v306
    %308 = vadd.xlane.f32.xlu0 %v307
    %v309 = vpop.xlane.xlu0 %308
    %v310 = vmul.f32 %v309, %v299
    %v311 = vadd.f32 %v310, 1e-05
    %v312 = vrsqrt.pop %v311
    %v313 = vmul.f32 %v301, %v312
    %v314 = vmul.f32 %v302, %v312
    %v316 = vlaneseq
    %v317 = vshrl.u32 %v316, 7
    %v318 = vsub.s32 0, %v317
    %v319 = vrot.slane %v291, %v318
    %v320 = vlaneseq
    %v321 = vshrl.u32 %v320, 7
    %v322 = vsub.s32 1, %v321
    %v323 = vrot.slane %v291, %v322
    %v326 = vmul.f32 %v313, %v319
    %v327 = vmul.f32 %v314, %v323
    %v329 = vlaneseq
    %v330 = vshrl.u32 %v329, 7
    %v331 = vsub.s32 0, %v330
    %v332 = vrot.slane %v292, %v331
    %v333 = vlaneseq
    %v334 = vshrl.u32 %v333, 7
    %v335 = vsub.s32 1, %v334
    %v336 = vrot.slane %v292, %v335
    %v339 = vadd.f32 %v326, %v332
    %v340 = vadd.f32 %v327, %v336
    %v341 = vld [vmem:[%s6] sm:$0xff]
    %v342 = vld [vmem:[%s6 + $0x8] sm:$0xff]
    %v343 = vld [vmem:[%s6 + $0x10] sm:$0xff]
    %v344 = vld [vmem:[%s6 + $0x18] sm:$0xff]
    %v345 = vld [vmem:[%s6 + $0x20] sm:$0xff]
    %v346 = vld [vmem:[%s6 + $0x28] sm:$0xff]
    %v347 = vld [vmem:[%s6 + $0x30] sm:$0xff]
    %v348 = vld [vmem:[%s6 + $0x38] sm:$0xff]
    %v349 = vld [vmem:[%s6 + $0x40] sm:$0xff]
    %v350 = vld [vmem:[%s6 + $0x48] sm:$0xff]
    %v351 = vld [vmem:[%s6 + $0x50] sm:$0xff]
    %v352 = vld [vmem:[%s6 + $0x58] sm:$0xff]
    %v353 = vld [vmem:[%s6 + $0x60] sm:$0xff]
    %v354 = vld [vmem:[%s6 + $0x68] sm:$0xff]
    %v355 = vld [vmem:[%s6 + $0x70] sm:$0xff]
    %v356 = vld [vmem:[%s6 + $0x78] sm:$0xff]
    %v357 = vld [vmem:[%s6 + $0x80] sm:$0xff]
    %v358 = vld [vmem:[%s6 + $0x88] sm:$0xff]
    %v359 = vld [vmem:[%s6 + $0x90] sm:$0xff]
    %v360 = vld [vmem:[%s6 + $0x98] sm:$0xff]
    %v361 = vld [vmem:[%s6 + $0xa0] sm:$0xff]
    %v362 = vld [vmem:[%s6 + $0xa8] sm:$0xff]
    %v363 = vld [vmem:[%s6 + $0xb0] sm:$0xff]
    %v364 = vld [vmem:[%s6 + $0xb8] sm:$0xff]
    %v365 = vld [vmem:[%s6 + $0xc0] sm:$0xff]
    %vm366 = vcmask 588800
    %v368 = vsel %vm366, %v340, 0
    %370 = vmatprep.subr.mxu0 0.0
    %371 = vmatpush1.msra.mxu0 %v341
    %372 = vmatprep.subr.mxu0 0.0
    %373 = vmatpush1.msra.mxu0 %v342
    %374 = vmatprep.subr.mxu0 0.0
    %375 = vmatpush1.msra.mxu0 %v343
    %376 = vmatprep.subr.mxu0 0.0
    %377 = vmatpush1.msra.mxu0 %v344
    %378 = vmatprep.subr.mxu0 0.0
    %379 = vmatpush1.msra.mxu0 %v345
    %380 = vmatprep.subr.mxu0 0.0
    %381 = vmatpush1.msra.mxu0 %v346
    %382 = vmatprep.subr.mxu0 0.0
    %383 = vmatpush1.msra.mxu0 %v347
    %384 = vmatprep.subr.mxu0 0.0
    %385 = vmatpush1.msra.mxu0 %v348
    %386 = vmatprep.subr.mxu0 0.0
    %387 = vmatpush1.msra.mxu0 %v349
    %388 = vmatprep.subr.mxu0 0.0
    %389 = vmatpush1.msra.mxu0 %v350
    %390 = vmatprep.subr.mxu0 0.0
    %391 = vmatpush1.msra.mxu0 %v351
    %392 = vmatprep.subr.mxu0 0.0
    %393 = vmatpush1.msra.mxu0 %v352
    %394 = vmatprep.subr.mxu0 0.0
    %395 = vmatpush1.msra.mxu0 %v353
    %396 = vmatprep.subr.mxu0 0.0
    %397 = vmatpush1.msra.mxu0 %v354
    %398 = vmatprep.subr.mxu0 0.0
    %399 = vmatpush1.msra.mxu0 %v355
    %400 = vmatprep.subr.mxu0 0.0
    %401 = vmatpush1.msra.mxu0 %v356
    %402 = vmatprep.subr.mxu0 0.0
    %403 = vmatpush1.msra.mxu0 %v357
    %404 = vmatprep.subr.mxu0 0.0
    %405 = vmatpush1.msra.mxu0 %v358
    %406 = vmatprep.subr.mxu0 0.0
    %407 = vmatpush1.msra.mxu0 %v359
    %408 = vmatprep.subr.mxu0 0.0
    %409 = vmatpush1.msra.mxu0 %v360
    %410 = vmatprep.subr.mxu0 0.0
    %411 = vmatpush1.msra.mxu0 %v361
    %412 = vmatprep.subr.mxu0 0.0
    %413 = vmatpush1.msra.mxu0 %v362
    %414 = vmatprep.subr.mxu0 0.0
    %415 = vmatpush1.msra.mxu0 %v363
    %416 = vmatprep.subr.mxu0 0.0
    %417 = vmatpush1.msra.mxu0 %v364
    %418 = vmatprep.subr.mxu0 0.0
    %419 = vmatpush1.msra.mxu0 %v365
    %420 = vmatprep.subr.mxu0 0.0
    %421 = vmatpush1.msra.mxu0 0.0
    %422 = vmatprep.subr.mxu0 0.0
    %423 = vmatpush1.msra.mxu0 0.0
    %424 = vmatprep.subr.mxu0 0.0
    %425 = vmatpush1.msra.mxu0 0.0
    %426 = vmatprep.subr.mxu0 0.0
    %427 = vmatpush1.msra.mxu0 0.0
    %428 = vmatprep.subr.mxu0 0.0
    %429 = vmatpush1.msra.mxu0 0.0
    %430 = vmatprep.subr.mxu0 0.0
    %431 = vmatpush1.msra.mxu0 0.0
    %432 = vmatprep.subr.mxu0 0.0
    %433 = vmatpush1.msra.mxu0 0.0
    %434 = vmatprep.mubr.f32.mxu0 %v368
    %435 = vmatmul.mubr.f32.gmra.mrb[0].mxu0 %v339
    %v436 = vpop.f32.mrb[0].mxu0
    %v437 = vadd.f32 0.0, %v436
    %v438 = vpop.f32.mrb[0].mxu0
    %439 = vdwg.mxu0
    %v440 = vmax.f32 %v437, 0.0
    %v441 = vld [vmem:[%s7] sm:$0x1]
    %v442 = vld [vmem:[%s8] sm:$0x1]
    %vm443 = vcmask 812032
    %v444 = vsel %vm443, %v440, 0.0
    %445 = vadd.xlane.f32.xlu0 %v444
    %v446 = vpop.xlane.xlu0 %445
    %v447 = vrcp.pop 100.0
    %v448 = vmul.f32 %v446, %v447
    %v449 = vsub.f32 %v440, %v448
    %v450 = vmul.f32 %v449, %v449
    %v451 = vsel %vm443, %v450, 0.0
    %452 = vadd.xlane.f32.xlu0 %v451
    %v453 = vpop.xlane.xlu0 %452
    %v454 = vmul.f32 %v453, %v447
    %v455 = vadd.f32 %v454, 1e-05
    %v456 = vrsqrt.pop %v455
    %v457 = vmul.f32 %v449, %v456
    %v459 = vlaneseq
    %v460 = vshrl.u32 %v459, 7
    %v461 = vsub.s32 0, %v460
    %v462 = vrot.slane %v441, %v461
    %v464 = vmul.f32 %v457, %v462
    %v466 = vlaneseq
    %v467 = vshrl.u32 %v466, 7
    %v468 = vsub.s32 0, %v467
    %v469 = vrot.slane %v442, %v468
    %v471 = vadd.f32 %v464, %v469
    %v472 = vld [vmem:[%s9] sm:$0xff]
    %v473 = vld [vmem:[%s9 + $0x8] sm:$0xff]
    %v474 = vld [vmem:[%s9 + $0x10] sm:$0xff]
    %v475 = vld [vmem:[%s9 + $0x18] sm:$0xff]
    %v476 = vld [vmem:[%s9 + $0x20] sm:$0xff]
    %v477 = vld [vmem:[%s9 + $0x28] sm:$0xff]
    %v478 = vld [vmem:[%s9 + $0x30] sm:$0xff]
    %v479 = vld [vmem:[%s9 + $0x38] sm:$0xff]
    %v480 = vld [vmem:[%s9 + $0x40] sm:$0xff]
    %v481 = vld [vmem:[%s9 + $0x48] sm:$0xff]
    %v482 = vld [vmem:[%s9 + $0x50] sm:$0xff]
    %v483 = vld [vmem:[%s9 + $0x58] sm:$0xff]
    %v484 = vld [vmem:[%s9 + $0x60] sm:$0xf]
    %vm485 = vcmask 818176
    %v487 = vsel %vm485, %v471, 0
    %vm489 = vcmask 1043456
    %v491 = vsel %vm489, %v484, 0
    %493 = vmatprep.subr.mxu0 0.0
    %494 = vmatpush1.msra.mxu0 %v472
    %495 = vmatprep.subr.mxu0 0.0
    %496 = vmatpush1.msra.mxu0 %v473
    %497 = vmatprep.subr.mxu0 0.0
    %498 = vmatpush1.msra.mxu0 %v474
    %499 = vmatprep.subr.mxu0 0.0
    %500 = vmatpush1.msra.mxu0 %v475
    %501 = vmatprep.subr.mxu0 0.0
    %502 = vmatpush1.msra.mxu0 %v476
    %503 = vmatprep.subr.mxu0 0.0
    %504 = vmatpush1.msra.mxu0 %v477
    %505 = vmatprep.subr.mxu0 0.0
    %506 = vmatpush1.msra.mxu0 %v478
    %507 = vmatprep.subr.mxu0 0.0
    %508 = vmatpush1.msra.mxu0 %v479
    %509 = vmatprep.subr.mxu0 0.0
    %510 = vmatpush1.msra.mxu0 %v480
    %511 = vmatprep.subr.mxu0 0.0
    %512 = vmatpush1.msra.mxu0 %v481
    %513 = vmatprep.subr.mxu0 0.0
    %514 = vmatpush1.msra.mxu0 %v482
    %515 = vmatprep.subr.mxu0 0.0
    %516 = vmatpush1.msra.mxu0 %v483
    %517 = vmatprep.subr.mxu0 0.0
    %518 = vmatpush1.msra.mxu0 %v491
    %519 = vmatprep.subr.mxu0 0.0
    %520 = vmatpush1.msra.mxu0 0.0
    %521 = vmatprep.subr.mxu0 0.0
    %522 = vmatpush1.msra.mxu0 0.0
    %523 = vmatprep.subr.mxu0 0.0
    %524 = vmatpush1.msra.mxu0 0.0
    %525 = vmatprep.subr.mxu0 0.0
    %526 = vmatpush1.msra.mxu0 0.0
    %527 = vmatprep.subr.mxu0 0.0
    %528 = vmatpush1.msra.mxu0 0.0
    %529 = vmatprep.subr.mxu0 0.0
    %530 = vmatpush1.msra.mxu0 0.0
    %531 = vmatprep.subr.mxu0 0.0
    %532 = vmatpush1.msra.mxu0 0.0
    %533 = vmatprep.subr.mxu0 0.0
    %534 = vmatpush1.msra.mxu0 0.0
    %535 = vmatprep.subr.mxu0 0.0
    %536 = vmatpush1.msra.mxu0 0.0
    %537 = vmatprep.subr.mxu0 0.0
    %538 = vmatpush1.msra.mxu0 0.0
    %539 = vmatprep.subr.mxu0 0.0
    %540 = vmatpush1.msra.mxu0 0.0
    %541 = vmatprep.subr.mxu0 0.0
    %542 = vmatpush1.msra.mxu0 0.0
    %543 = vmatprep.subr.mxu0 0.0
    %544 = vmatpush1.msra.mxu0 0.0
    %545 = vmatprep.subr.mxu0 0.0
    %546 = vmatpush1.msra.mxu0 0.0
    %547 = vmatprep.subr.mxu0 0.0
    %548 = vmatpush1.msra.mxu0 0.0
    %549 = vmatprep.subr.mxu0 0.0
    %550 = vmatpush1.msra.mxu0 0.0
    %551 = vmatprep.subr.mxu0 0.0
    %552 = vmatpush1.msra.mxu0 0.0
    %553 = vmatprep.subr.mxu0 0.0
    %554 = vmatpush1.msra.mxu0 0.0
    %555 = vmatprep.subr.mxu0 0.0
    %556 = vmatpush1.msra.mxu0 0.0
    %557 = vmatprep.mubr.f32.mxu0 0.0
    %558 = vmatmul.mubr.f32.gmra.mrb[0].mxu0 %v487
    %v559 = vpop.f32.mrb[0].mxu0
    %v560 = vadd.f32 0.0, %v559
    %v561 = vpop.f32.mrb[0].mxu0
    %562 = vdwg.mxu0
    %v563 = vmax.f32 %v560, 0.0
    %v564 = vld [vmem:[%s10] sm:$0x1]
    %v565 = vld [vmem:[%s11] sm:$0x1]
    %vm566 = vcmask 402432
    %v567 = vsel %vm566, %v563, 0.0
    %568 = vadd.xlane.f32.xlu0 %v567
    %v569 = vpop.xlane.xlu0 %568
    %v570 = vrcp.pop 50.0
    %v571 = vmul.f32 %v569, %v570
    %v572 = vsub.f32 %v563, %v571
    %v573 = vmul.f32 %v572, %v572
    %v574 = vsel %vm566, %v573, 0.0
    %575 = vadd.xlane.f32.xlu0 %v574
    %v576 = vpop.xlane.xlu0 %575
    %v577 = vmul.f32 %v576, %v570
    %v578 = vadd.f32 %v577, 1e-05
    %v579 = vrsqrt.pop %v578
    %v580 = vmul.f32 %v572, %v579
    %v582 = vlaneseq
    %v583 = vshrl.u32 %v582, 7
    %v584 = vsub.s32 0, %v583
    %v585 = vrot.slane %v564, %v584
    %v587 = vmul.f32 %v580, %v585
    %v589 = vlaneseq
    %v590 = vshrl.u32 %v589, 7
    %v591 = vsub.s32 0, %v590
    %v592 = vrot.slane %v565, %v591
    %v594 = vadd.f32 %v587, %v592
    %vm595 = vcmask 408576
    %v596 = vsel %vm595, %v594, 0.0
    %597 = vst [vmem:[#allocation2] sm:$0x3] %v596
    // Predicated region
    $region50: #{linear_net_forward.1} parent=1 // pred_check
      _
    $region51: #{linear_net_forward.1} parent=1 // pred_check_branch
      %599 = sbr.rel (0) target = $region53
    $region52: #{linear_net_forward.1} parent=1 // pred_region
      %s601 = ssub.s32 32, 32
      %602 = vsyncadd [#allocation3], %s601
      %s604 = sshll.u32 [#allocation2], 4
      %s605 = int_to_ptr.vmem [resolvable:$true] %s604
      %607 = dma.vmem_to_hbm [thread:$0]  %s605, 32, %s12, [#allocation3]
    $region53: #{linear_net_forward.1} parent=1 // pred_fallthru
      _
    // Predicated region
    $region54: #{linear_net_forward.1} parent=1 // pred_check
      _
    $region55: #{linear_net_forward.1} parent=1 // pred_check_branch
      %609 = sbr.rel (0) target = $region57
    $region56: #{linear_net_forward.1} parent=1 // pred_region
      %610 = dma.done [#allocation3], 32
    $region57: #{linear_net_forward.1} parent=1 // pred_fallthru
      _
    %611 = vsyncpa [#allocation3], 1

</llo_original>
